<compile_context>
chip_gen: v7x
topology: tpu7x:2x2x1
jax: 0.10.0
libtpu: 0.0.40
codegen_flags: <defaults>
</compile_context>

<pallas_src>
import math

import jax
import jax.numpy as jnp
from jax.experimental import pallas as pl
from jax.experimental.pallas import tpu as pltpu

MIB = 1024 * 1024


def _adaptive_pool_matrix(out_size: int, in_size: int) -> jnp.ndarray:
    """Rows average the adaptive windows (PyTorch floor/ceil window formula)."""
    rows = []
    for i in range(out_size):
        start = (i * in_size) // out_size
        end = math.ceil((i + 1) * in_size / out_size)
        inv = 1.0 / (end - start)
        rows.append([inv if start <= k < end else 0.0 for k in range(in_size)])
    return jnp.asarray(rows, dtype=jnp.float32)


def _round_up(n: int, m: int) -> int:
    return ((n + m - 1) // m) * m


def _round_down(n: int, m: int) -> int:
    return (n // m) * m


def _pool_kernel(rt_ref, x_ref, o_ref):
    # rt_ref: (tk2, P2)  chunk of kron(R, I2)^T (tiny lane width, varies only with k)
    # x_ref : (tb, tk2)  tb flattened interleaved planes -> canonical MXU LHS
    # o_ref : (tb, P2)   pooled planes; block resident across the k (reduction) axis
    @pl.when(pl.program_id(1) == 0)
    def _():
        o_ref[...] = jnp.zeros_like(o_ref)

    o_ref[...] += jnp.dot(x_ref[...], rt_ref[...],
                          preferred_element_type=jnp.float32)


def _vmem_budget_and_limit():
    """Per-TPU-generation (budget for tile chooser, Mosaic vmem_limit_bytes)."""
    cap = 64 * MIB  # conservative default: assume v7x-sized physical VMEM
    try:
        cap = int(pltpu.get_tpu_info().vmem_capacity_bytes)
    except Exception:
        pass
    if cap >= 128 * MIB:            # v5e / v6e: 128 MiB physical VMEM
        return 88 * MIB, 100 * MIB
    return 40 * MIB, 48 * MIB       # v7x: 64 MiB physical, leave Mosaic headroom


def _choose_tiles(B: int, K2: int, P2: int, budget_bytes: int):
    """Pick (tb planes/step, tk2 contraction chunk), both in f32 elements.

    Legality: tb is a multiple of 8 or equals B; tk2 is a multiple of 128 that
    exactly divides K2, or equals K2 (full extent).  The VMEM estimate uses
    padded shapes (lanes -> 128, sublanes -> 8) and double-buffered blocks.
    """
    P2_l = _round_up(P2, 128)

    # Keep >= 2 grid steps over planes when B >= 256 so v7x's two TensorCores
    # both get work on the "parallel" plane axis.
    if B >= 256:
        tb_cap = min(B, _round_up((B + 1) // 2, 8))
    else:
        tb_cap = B
    tb_min = tb_cap if tb_cap < 8 else 8

    def max_tb(tk2):
        fixed = 2 * _round_up(tk2, 8) * P2_l * 4              # RT2 tile, 2 bufs
        per_row = (2 * _round_up(tk2, 128) + 2 * P2_l) * 4    # X + out, 2 bufs
        rows = max(budget_bytes - fixed, 0) // per_row
        if rows >= tb_cap:
            return tb_cap
        return _round_down(rows, 8)

    # 1) Prefer the whole contraction axis in one block (single k step).
    tb = max_tb(K2)
    if tb >= tb_min:
        return tb, K2

    # 2) Tile the contraction axis.  Only exact multiple-of-128 tilings are
    #    used, so no partial K block can feed padding garbage into the sum.
    if K2 % 128 == 0:
        n128 = K2 // 128
        best_tb, best_tk2 = 0, K2
        for ntk in range(2, n128 + 1):
            if n128 % ntk:
                continue
            tk2 = K2 // ntk
            t = max_tb(tk2)
            if t > best_tb:
                best_tb, best_tk2 = t, tk2
            if best_tb >= min(tb_cap, 512):
                break
        if best_tb >= tb_min:
            return best_tb, best_tk2

    # TODO(synk): planes so large that even tk2=128 (or an un-tileable K2 that
    # is not a multiple of 128) exceeds the budget; fall back to the smallest
    # legal plane tile and rely on vmem_limit_bytes headroom.
    return tb_min, K2


def _pooled_planes(x2, rt2, tb, tk2, vmem_limit_bytes):
    """x2: (B, 2*HW) f32 interleaved planes; rt2: (2*HW, 2*P) f32 -> (B, 2*P)."""
    B, K2 = x2.shape
    P2 = rt2.shape[1]
    grid = (pl.cdiv(B, tb), pl.cdiv(K2, tk2))
    return pl.pallas_call(
        _pool_kernel,
        out_shape=jax.ShapeDtypeStruct((B, P2), jnp.float32),
        grid_spec=pltpu.PrefetchScalarGridSpec(
            num_scalar_prefetch=0,
            grid=grid,
            in_specs=[
                pl.BlockSpec((tk2, P2), lambda b, k: (k, 0)),   # RT2 chunk
                pl.BlockSpec((tb, tk2), lambda b, k: (b, k)),   # plane rows
            ],
            out_specs=pl.BlockSpec((tb, P2), lambda b, k: (b, 0)),
        ),
        compiler_params=pltpu.CompilerParams(
            dimension_semantics=("parallel", "arbitrary"),
            vmem_limit_bytes=vmem_limit_bytes,
        ),
    )(rt2, x2)


def _complex_as_interleaved_f32(x):
    """complex64 (...,) -> float32 (..., 2) holding [real, imag].

    Uses a free bitcast view when the installed JAX supports bitcasting complex
    dtypes; otherwise falls back to one explicit interleave pass.
    """
    try:
        return jax.lax.bitcast_convert_type(x, jnp.float32)
    except Exception:
        # TODO(synk): lax.bitcast_convert_type rejects complex dtypes on this
        # JAX version, so the interleave costs one extra HBM pass here.
        return jnp.stack(
            [jnp.real(x).astype(jnp.float32), jnp.imag(x).astype(jnp.float32)],
            axis=-1)


def complex_adaptive_avg_pool2d(x_complex, output_size):
    """Equivalent of ComplexAdaptiveAvgPool2d.forward.

    x_complex: complex64 array of shape (N, C, H, W).
    Returns complex64 array of shape (N, C, OH, OW).
    """
    if isinstance(output_size, int):
        output_size = (output_size, output_size)
    OH, OW = output_size
    N, C, H, W = x_complex.shape
    B = N * C
    HW = H * W
    P = OH * OW
    K2 = 2 * HW
    P2 = 2 * P

    # One input array with real/imag interleaved along the lane axis.
    x2 = _complex_as_interleaved_f32(x_complex).reshape(B, K2)

    # Separable adaptive pooling folded into one matrix; the real/imag
    # interleave folded in via kron with I2; pre-transposed so the kernel
    # streams X as the canonical MXU LHS (no transpose of the big tile).
    rh = _adaptive_pool_matrix(OH, H)                      # (OH, H)
    rw = _adaptive_pool_matrix(OW, W)                      # (OW, W)
    r = jnp.kron(rh, rw)                                   # (P, HW)
    rt2 = jnp.kron(r.T, jnp.eye(2, dtype=jnp.float32))     # (2*HW, 2*P)

    budget, vmem_limit = _vmem_budget_and_limit()
    tb, tk2 = _choose_tiles(B, K2, P2, budget)
    out = _pooled_planes(x2, rt2, tb, tk2, vmem_limit)     # (B, 2*P) f32

    # Tiny output: recombine interleaved [re, im] pairs and reshape to NCHW.
    out3 = out.reshape(B, P, 2)
    pooled = jax.lax.complex(out3[..., 0], out3[..., 1])   # (B, P) complex64
    return pooled.reshape(N, C, OH, OW)


def _reference(x_complex, output_size):
    """Pure-JAX reference for correctness checking."""
    if isinstance(output_size, int):
        output_size = (output_size, output_size)
    OH, OW = output_size
    rh = _adaptive_pool_matrix(OH, x_complex.shape[2])
    rw = _adaptive_pool_matrix(OW, x_complex.shape[3])
    pr = jnp.einsum("oh,nchw,pw->ncop", rh,
                    jnp.real(x_complex).astype(jnp.float32), rw)
    pi = jnp.einsum("oh,nchw,pw->ncop", rh,
                    jnp.imag(x_complex).astype(jnp.float32), rw)
    return jax.lax.complex(pr, pi)


if __name__ == "__main__":
    key = jax.random.PRNGKey(0)

    # Test 1: typical module shape.
    N, C, H, W = 2, 4, 16, 16
    output_size = (4, 4)
    k_re, k_im = jax.random.split(key)
    x = jax.lax.complex(
        jax.random.normal(k_re, (N, C, H, W), dtype=jnp.float32),
        jax.random.normal(k_im, (N, C, H, W), dtype=jnp.float32))
    out = jax.block_until_ready(complex_adaptive_avg_pool2d(x, output_size))
    ref = _reference(x, output_size)
    assert out.shape == (N, C, output_size[0], output_size[1])
    assert out.dtype == jnp.complex64
    assert jnp.allclose(out, ref, atol=1e-5, rtol=1e-5)

    # Test 2: int output_size, overlapping adaptive windows, tiny odd batch.
    k2_re, k2_im = jax.random.split(k_im)
    x_small = jax.lax.complex(
        jax.random.normal(k2_re, (3, 1, 8, 8), dtype=jnp.float32),
        jax.random.normal(k2_im, (3, 1, 8, 8), dtype=jnp.float32))
    out2 = jax.block_until_ready(complex_adaptive_avg_pool2d(x_small, 3))
    ref2 = _reference(x_small, 3)
    assert out2.shape == (3, 1, 3, 3)
    assert out2.dtype == jnp.complex64
    assert jnp.allclose(out2, ref2, atol=1e-5, rtol=1e-5)

    print("KERNEL_OK")
</pallas_src>

<mosaic_0001>
module attributes {stable_mosaic.version = 11 : i64} {
  func.func @_pool_kernel(%arg0: i32, %arg1: i32, %arg2: memref<512x32xf32, #tpu.memory_space<vmem>>, %arg3: memref<8x512xf32, #tpu.memory_space<vmem>>, %arg4: memref<8x32xf32, #tpu.memory_space<vmem>>) attributes {dimension_semantics = [#tpu.dimension_semantics<parallel>, #tpu.dimension_semantics<arbitrary>], iteration_bounds = array<i64: 1, 1>, scalar_prefetch = 0 : i64, scratch_operands = 0 : i64, tpu.core_type = #tpu.core_type<tc>, window_params = [{transform_indices = @transform_0, window_bounds = array<i64: 512, 32>}, {transform_indices = @transform_1, window_bounds = array<i64: 8, 512>}, {transform_indices = @transform_2, window_bounds = array<i64: 8, 32>}]} {
    %c0_i32 = arith.constant 0 : i32
    %0 = arith.cmpi eq, %arg1, %c0_i32 : i32
    %1 = arith.extui %0 : i1 to i32
    %c0_i32_0 = arith.constant 0 : i32
    %2 = arith.cmpi ne, %1, %c0_i32_0 : i32
    scf.if %2 {
      %cst_8 = arith.constant 0.000000e+00 : f32
      %9 = vector.broadcast %cst_8 : f32 to vector<8x32xf32>
      %c0_9 = arith.constant 0 : index
      %c0_10 = arith.constant 0 : index
      %10 = vector.load %arg4[%c0_9, %c0_10] : memref<8x32xf32, #tpu.memory_space<vmem>>, vector<8x32xf32>
      tpu.vector_store %arg4[%c0_9, %c0_10], %9 {strides = array<i32>} : memref<8x32xf32, #tpu.memory_space<vmem>>, vector<8x32xf32>,
    } else {
    }
    %c0 = arith.constant 0 : index
    %c0_1 = arith.constant 0 : index
    %3 = vector.load %arg4[%c0, %c0_1] : memref<8x32xf32, #tpu.memory_space<vmem>>, vector<8x32xf32>
    %c0_2 = arith.constant 0 : index
    %c0_3 = arith.constant 0 : index
    %4 = vector.load %arg3[%c0_2, %c0_3] : memref<8x512xf32, #tpu.memory_space<vmem>>, vector<8x512xf32>
    %c0_4 = arith.constant 0 : index
    %c0_5 = arith.constant 0 : index
    %5 = vector.load %arg2[%c0_4, %c0_5] : memref<512x32xf32, #tpu.memory_space<vmem>>, vector<512x32xf32>
    %cst = arith.constant dense<0.000000e+00> : vector<8x32xf32>
    %6 = tpu.matmul %4, %5, %cst {dimension_numbers = #tpu.dot_dimension_numbers<[1], [0], [0], [1], [0, 0, 1, 1], [], []>} : vector<8x512xf32>, vector<512x32xf32>, vector<8x32xf32> -> vector<8x32xf32>
    %7 = arith.addf %3, %6 : vector<8x32xf32>
    %c0_6 = arith.constant 0 : index
    %c0_7 = arith.constant 0 : index
    %8 = vector.load %arg4[%c0_6, %c0_7] : memref<8x32xf32, #tpu.memory_space<vmem>>, vector<8x32xf32>
    tpu.vector_store %arg4[%c0_6, %c0_7], %7 {strides = array<i32>} : memref<8x32xf32, #tpu.memory_space<vmem>>, vector<8x32xf32>,
    return
  }
  func.func @transform_0(%arg0: i32, %arg1: i32) -> (i32, i32) {
    %c0_i32 = arith.constant 0 : i32
    %c0_i32_0 = arith.constant 0 : i32
    return %arg1, %c0_i32 : i32, i32
  }
  func.func @transform_1(%arg0: i32, %arg1: i32) -> (i32, i32) {
    %c0_i32 = arith.constant 0 : i32
    return %arg0, %arg1 : i32, i32
  }
  func.func @transform_2(%arg0: i32, %arg1: i32) -> (i32, i32) {
    %c0_i32 = arith.constant 0 : i32
    %c0_i32_0 = arith.constant 0 : i32
    return %arg0, %c0_i32 : i32, i32
  }
}

</mosaic_0001>

<llo_original>
// kernel: tpu_custom_call.1
$region0: #{tpu_custom_call.1}
  #allocation0 [shape = 'u32[]', space=smem, size = 0x4, offset = 0x4, fixed_abs, tag = 'smem constant byte address 0x4 - core index']
  #allocation1 [shape = 'u32[144,128]{1,0:T(1,128)}', space=vmem, size = 0x12000, scoped, tag = 'internal scratch']
  %s0 = inlined_call_operand.vmem [shape: f32[512,32], index: 0, kind: input, shape index: {}]
  %s1 = inlined_call_operand.vmem [shape: f32[8,512], index: 1, kind: input, shape index: {}]
  %s2 = inlined_call_operand.hbm [shape: f32[8,32], index: 2, kind: output, shape index: {}]
  %s3 = sld [smem:[#allocation0]]
  $region22: #{tpu_custom_call.1} parent=0
    _
  %s5 = ssub.s32 1, %s3
  %s6 = scalar_select 0, %s5, %s3
  $region1: #{tpu_custom_call.1} parent=0
    #allocation2 [shape = 'u8[4096]{0}', space=vmem, size = 0x1000, scoped, tag = 'output window, operand 0, single buffered']
    #allocation3 [shape = 's32[1]{0}', space=sflag, size = 0x4, scoped, tag = 'scoped memory for tpu_custom_call.1']
    %7 = vsyncpa [#allocation3], 0
    // Predicated region
    $region2: #{tpu_custom_call.1} parent=1 // pred_check
      _
    $region3: #{tpu_custom_call.1} parent=1 // pred_check_branch
      %9 = sbr.rel (0) target = $region5
    $region4: #{tpu_custom_call.1} parent=1 // pred_region
      _
    $region5: #{tpu_custom_call.1} parent=1 // pred_fallthru
      _
    // Predicated region
    $region6: #{tpu_custom_call.1} parent=1 // pred_check
      _
    $region7: #{tpu_custom_call.1} parent=1 // pred_check_branch
      %11 = sbr.rel (0) target = $region9
    $region8: #{tpu_custom_call.1} parent=1 // pred_region
      _
    $region9: #{tpu_custom_call.1} parent=1 // pred_fallthru
      _
    %p12 = scmp.eq.s32.totalorder 0, 0
    // Predicated region
    $region10: #{tpu_custom_call.1} parent=1 // pred_check
      %p13 = pneg %p12
    $region11: #{tpu_custom_call.1} parent=1 // pred_check_branch
      %15 = sbr.rel (%p13) target = $region13
    $region12: #{tpu_custom_call.1} parent=1 // pred_region
      %vm16 = vcmask 261120
      %17 = vst.msk [vmem:[#allocation2] sm:$0xff] %vm16, 0.0
    $region13: #{tpu_custom_call.1} parent=1 // pred_fallthru
      _
    %v18 = vld [vmem:[#allocation2] sm:$0xff]
    %v19 = vld [vmem:[%s1] sm:$0xff]
    %v20 = vld [vmem:[%s1 + $0x8] sm:$0xff]
    %v21 = vld [vmem:[%s1 + $0x10] sm:$0xff]
    %v22 = vld [vmem:[%s1 + $0x18] sm:$0xff]
    %v23 = vld [vmem:[%s0] sm:$0xff]
    %v24 = vld [vmem:[%s0 + $0x8] sm:$0xff]
    %v25 = vld [vmem:[%s0 + $0x10] sm:$0xff]
    %v26 = vld [vmem:[%s0 + $0x18] sm:$0xff]
    %v27 = vld [vmem:[%s0 + $0x20] sm:$0xff]
    %v28 = vld [vmem:[%s0 + $0x28] sm:$0xff]
    %v29 = vld [vmem:[%s0 + $0x30] sm:$0xff]
    %v30 = vld [vmem:[%s0 + $0x38] sm:$0xff]
    %v31 = vld [vmem:[%s0 + $0x40] sm:$0xff]
    %v32 = vld [vmem:[%s0 + $0x48] sm:$0xff]
    %v33 = vld [vmem:[%s0 + $0x50] sm:$0xff]
    %v34 = vld [vmem:[%s0 + $0x58] sm:$0xff]
    %v35 = vld [vmem:[%s0 + $0x60] sm:$0xff]
    %v36 = vld [vmem:[%s0 + $0x68] sm:$0xff]
    %v37 = vld [vmem:[%s0 + $0x70] sm:$0xff]
    %v38 = vld [vmem:[%s0 + $0x78] sm:$0xff]
    %v39 = vld [vmem:[%s0 + $0x80] sm:$0xff]
    %v40 = vld [vmem:[%s0 + $0x88] sm:$0xff]
    %v41 = vld [vmem:[%s0 + $0x90] sm:$0xff]
    %v42 = vld [vmem:[%s0 + $0x98] sm:$0xff]
    %v43 = vld [vmem:[%s0 + $0xa0] sm:$0xff]
    %v44 = vld [vmem:[%s0 + $0xa8] sm:$0xff]
    %v45 = vld [vmem:[%s0 + $0xb0] sm:$0xff]
    %v46 = vld [vmem:[%s0 + $0xb8] sm:$0xff]
    %v47 = vld [vmem:[%s0 + $0xc0] sm:$0xff]
    %v48 = vld [vmem:[%s0 + $0xc8] sm:$0xff]
    %v49 = vld [vmem:[%s0 + $0xd0] sm:$0xff]
    %v50 = vld [vmem:[%s0 + $0xd8] sm:$0xff]
    %v51 = vld [vmem:[%s0 + $0xe0] sm:$0xff]
    %v52 = vld [vmem:[%s0 + $0xe8] sm:$0xff]
    %v53 = vld [vmem:[%s0 + $0xf0] sm:$0xff]
    %v54 = vld [vmem:[%s0 + $0xf8] sm:$0xff]
    %v55 = vld [vmem:[%s0 + $0x100] sm:$0xff]
    %v56 = vld [vmem:[%s0 + $0x108] sm:$0xff]
    %v57 = vld [vmem:[%s0 + $0x110] sm:$0xff]
    %v58 = vld [vmem:[%s0 + $0x118] sm:$0xff]
    %v59 = vld [vmem:[%s0 + $0x120] sm:$0xff]
    %v60 = vld [vmem:[%s0 + $0x128] sm:$0xff]
    %v61 = vld [vmem:[%s0 + $0x130] sm:$0xff]
    %v62 = vld [vmem:[%s0 + $0x138] sm:$0xff]
    %v63 = vld [vmem:[%s0 + $0x140] sm:$0xff]
    %v64 = vld [vmem:[%s0 + $0x148] sm:$0xff]
    %v65 = vld [vmem:[%s0 + $0x150] sm:$0xff]
    %v66 = vld [vmem:[%s0 + $0x158] sm:$0xff]
    %v67 = vld [vmem:[%s0 + $0x160] sm:$0xff]
    %v68 = vld [vmem:[%s0 + $0x168] sm:$0xff]
    %v69 = vld [vmem:[%s0 + $0x170] sm:$0xff]
    %v70 = vld [vmem:[%s0 + $0x178] sm:$0xff]
    %v71 = vld [vmem:[%s0 + $0x180] sm:$0xff]
    %v72 = vld [vmem:[%s0 + $0x188] sm:$0xff]
    %v73 = vld [vmem:[%s0 + $0x190] sm:$0xff]
    %v74 = vld [vmem:[%s0 + $0x198] sm:$0xff]
    %v75 = vld [vmem:[%s0 + $0x1a0] sm:$0xff]
    %v76 = vld [vmem:[%s0 + $0x1a8] sm:$0xff]
    %v77 = vld [vmem:[%s0 + $0x1b0] sm:$0xff]
    %v78 = vld [vmem:[%s0 + $0x1b8] sm:$0xff]
    %v79 = vld [vmem:[%s0 + $0x1c0] sm:$0xff]
    %v80 = vld [vmem:[%s0 + $0x1c8] sm:$0xff]
    %v81 = vld [vmem:[%s0 + $0x1d0] sm:$0xff]
    %v82 = vld [vmem:[%s0 + $0x1d8] sm:$0xff]
    %v83 = vld [vmem:[%s0 + $0x1e0] sm:$0xff]
    %v84 = vld [vmem:[%s0 + $0x1e8] sm:$0xff]
    %v85 = vld [vmem:[%s0 + $0x1f0] sm:$0xff]
    %v86 = vld [vmem:[%s0 + $0x1f8] sm:$0xff]
    %87 = vmatprep.subr.mxu0 0.0
    %88 = vmatpush1.msra.mxu0 %v23
    %89 = vmatprep.subr.mxu0 0.0
    %90 = vmatpush1.msra.mxu0 %v24
    %91 = vmatprep.subr.mxu0 0.0
    %92 = vmatpush1.msra.mxu0 %v25
    %93 = vmatprep.subr.mxu0 0.0
    %94 = vmatpush1.msra.mxu0 %v26
    %95 = vmatprep.subr.mxu0 0.0
    %96 = vmatpush1.msra.mxu0 %v27
    %97 = vmatprep.subr.mxu0 0.0
    %98 = vmatpush1.msra.mxu0 %v28
    %99 = vmatprep.subr.mxu0 0.0
    %100 = vmatpush1.msra.mxu0 %v29
    %101 = vmatprep.subr.mxu0 0.0
    %102 = vmatpush1.msra.mxu0 %v30
    %103 = vmatprep.subr.mxu0 0.0
    %104 = vmatpush1.msra.mxu0 %v31
    %105 = vmatprep.subr.mxu0 0.0
    %106 = vmatpush1.msra.mxu0 %v32
    %107 = vmatprep.subr.mxu0 0.0
    %108 = vmatpush1.msra.mxu0 %v33
    %109 = vmatprep.subr.mxu0 0.0
    %110 = vmatpush1.msra.mxu0 %v34
    %111 = vmatprep.subr.mxu0 0.0
    %112 = vmatpush1.msra.mxu0 %v35
    %113 = vmatprep.subr.mxu0 0.0
    %114 = vmatpush1.msra.mxu0 %v36
    %115 = vmatprep.subr.mxu0 0.0
    %116 = vmatpush1.msra.mxu0 %v37
    %117 = vmatprep.subr.mxu0 0.0
    %118 = vmatpush1.msra.mxu0 %v38
    %119 = vmatprep.subr.mxu0 0.0
    %120 = vmatpush1.msra.mxu0 %v39
    %121 = vmatprep.subr.mxu0 0.0
    %122 = vmatpush1.msra.mxu0 %v40
    %123 = vmatprep.subr.mxu0 0.0
    %124 = vmatpush1.msra.mxu0 %v41
    %125 = vmatprep.subr.mxu0 0.0
    %126 = vmatpush1.msra.mxu0 %v42
    %127 = vmatprep.subr.mxu0 0.0
    %128 = vmatpush1.msra.mxu0 %v43
    %129 = vmatprep.subr.mxu0 0.0
    %130 = vmatpush1.msra.mxu0 %v44
    %131 = vmatprep.subr.mxu0 0.0
    %132 = vmatpush1.msra.mxu0 %v45
    %133 = vmatprep.subr.mxu0 0.0
    %134 = vmatpush1.msra.mxu0 %v46
    %135 = vmatprep.subr.mxu0 0.0
    %136 = vmatpush1.msra.mxu0 %v47
    %137 = vmatprep.subr.mxu0 0.0
    %138 = vmatpush1.msra.mxu0 %v48
    %139 = vmatprep.subr.mxu0 0.0
    %140 = vmatpush1.msra.mxu0 %v49
    %141 = vmatprep.subr.mxu0 0.0
    %142 = vmatpush1.msra.mxu0 %v50
    %143 = vmatprep.subr.mxu0 0.0
    %144 = vmatpush1.msra.mxu0 %v51
    %145 = vmatprep.subr.mxu0 0.0
    %146 = vmatpush1.msra.mxu0 %v52
    %147 = vmatprep.subr.mxu0 0.0
    %148 = vmatpush1.msra.mxu0 %v53
    %149 = vmatprep.subr.mxu0 0.0
    %150 = vmatpush1.msra.mxu0 %v54
    %151 = vmatprep.mubr.f32.mxu0 %v20
    %152 = vmatmul.mubr.f32.gmra.mrb[0].mxu0 %v19
    %v153 = vpop.f32.mrb[0].mxu0
    %v154 = vadd.f32 0.0, %v153
    %v155 = vpop.f32.mrb[0].mxu0
    %156 = vdwg.mxu0
    %157 = vmatprep.subr.mxu0 0.0
    %158 = vmatpush1.msra.mxu0 %v55
    %159 = vmatprep.subr.mxu0 0.0
    %160 = vmatpush1.msra.mxu0 %v56
    %161 = vmatprep.subr.mxu0 0.0
    %162 = vmatpush1.msra.mxu0 %v57
    %163 = vmatprep.subr.mxu0 0.0
    %164 = vmatpush1.msra.mxu0 %v58
    %165 = vmatprep.subr.mxu0 0.0
    %166 = vmatpush1.msra.mxu0 %v59
    %167 = vmatprep.subr.mxu0 0.0
    %168 = vmatpush1.msra.mxu0 %v60
    %169 = vmatprep.subr.mxu0 0.0
    %170 = vmatpush1.msra.mxu0 %v61
    %171 = vmatprep.subr.mxu0 0.0
    %172 = vmatpush1.msra.mxu0 %v62
    %173 = vmatprep.subr.mxu0 0.0
    %174 = vmatpush1.msra.mxu0 %v63
    %175 = vmatprep.subr.mxu0 0.0
    %176 = vmatpush1.msra.mxu0 %v64
    %177 = vmatprep.subr.mxu0 0.0
    %178 = vmatpush1.msra.mxu0 %v65
    %179 = vmatprep.subr.mxu0 0.0
    %180 = vmatpush1.msra.mxu0 %v66
    %181 = vmatprep.subr.mxu0 0.0
    %182 = vmatpush1.msra.mxu0 %v67
    %183 = vmatprep.subr.mxu0 0.0
    %184 = vmatpush1.msra.mxu0 %v68
    %185 = vmatprep.subr.mxu0 0.0
    %186 = vmatpush1.msra.mxu0 %v69
    %187 = vmatprep.subr.mxu0 0.0
    %188 = vmatpush1.msra.mxu0 %v70
    %189 = vmatprep.subr.mxu0 0.0
    %190 = vmatpush1.msra.mxu0 %v71
    %191 = vmatprep.subr.mxu0 0.0
    %192 = vmatpush1.msra.mxu0 %v72
    %193 = vmatprep.subr.mxu0 0.0
    %194 = vmatpush1.msra.mxu0 %v73
    %195 = vmatprep.subr.mxu0 0.0
    %196 = vmatpush1.msra.mxu0 %v74
    %197 = vmatprep.subr.mxu0 0.0
    %198 = vmatpush1.msra.mxu0 %v75
    %199 = vmatprep.subr.mxu0 0.0
    %200 = vmatpush1.msra.mxu0 %v76
    %201 = vmatprep.subr.mxu0 0.0
    %202 = vmatpush1.msra.mxu0 %v77
    %203 = vmatprep.subr.mxu0 0.0
    %204 = vmatpush1.msra.mxu0 %v78
    %205 = vmatprep.subr.mxu0 0.0
    %206 = vmatpush1.msra.mxu0 %v79
    %207 = vmatprep.subr.mxu0 0.0
    %208 = vmatpush1.msra.mxu0 %v80
    %209 = vmatprep.subr.mxu0 0.0
    %210 = vmatpush1.msra.mxu0 %v81
    %211 = vmatprep.subr.mxu0 0.0
    %212 = vmatpush1.msra.mxu0 %v82
    %213 = vmatprep.subr.mxu0 0.0
    %214 = vmatpush1.msra.mxu0 %v83
    %215 = vmatprep.subr.mxu0 0.0
    %216 = vmatpush1.msra.mxu0 %v84
    %217 = vmatprep.subr.mxu0 0.0
    %218 = vmatpush1.msra.mxu0 %v85
    %219 = vmatprep.subr.mxu0 0.0
    %220 = vmatpush1.msra.mxu0 %v86
    %221 = vmatprep.mubr.f32.mxu0 %v22
    %222 = vmatmul.mubr.f32.gmra.mrb[0].mxu0 %v21
    %v223 = vpop.f32.mrb[0].mxu0
    %v224 = vadd.f32 %v154, %v223
    %v225 = vpop.f32.mrb[0].mxu0
    %226 = vdwg.mxu0
    %v227 = vadd.f32 %v18, %v224
    %vm228 = vcmask 261120
    %229 = vst.msk [vmem:[#allocation2] sm:$0xff] %vm228, %v227
    // Predicated region
    $region14: #{tpu_custom_call.1} parent=1 // pred_check
      _
    $region15: #{tpu_custom_call.1} parent=1 // pred_check_branch
      %231 = sbr.rel (0) target = $region17
    $region16: #{tpu_custom_call.1} parent=1 // pred_region
      %s233 = ssub.s32 128, 128
      %234 = vsyncadd [#allocation3], %s233
      %s236 = sshll.u32 [#allocation2], 4
      %s237 = int_to_ptr.vmem [resolvable:$true] %s236
      %239 = dma.vmem_to_hbm [thread:$0]  %s237, 128, %s2, [#allocation3]
    $region17: #{tpu_custom_call.1} parent=1 // pred_fallthru
      _
    // Predicated region
    $region18: #{tpu_custom_call.1} parent=1 // pred_check
      _
    $region19: #{tpu_custom_call.1} parent=1 // pred_check_branch
      %241 = sbr.rel (0) target = $region21
    $region20: #{tpu_custom_call.1} parent=1 // pred_region
      %242 = dma.done [#allocation3], 128
    $region21: #{tpu_custom_call.1} parent=1 // pred_fallthru
      _
    %243 = vsyncpa [#allocation3], 1

</llo_original>
